<compile_context>
chip_gen: v5e
topology: v5e:2x2
jax: 0.10.0
libtpu: 0.0.40
codegen_flags: <defaults>
</compile_context>

<pallas_src>
import functools

import jax
import jax.numpy as jnp
from jax.experimental import pallas as pl
from jax.experimental.pallas import tpu as pltpu


def _round_up(x, m):
    return (x + m - 1) // m * m


def _gmmnet_kernel(K, L, Lpad, w_ref, aux_ref, mu_ref, std_ref):
    """Whole GMMNet forward in one kernel invocation.

    w_ref   : (2K*Lpad, L)  head-stacked fused weight; rows [h*Lpad, h*Lpad+L)
              hold head h's (in, out) weight (heads: mu_0..mu_{K-1}, lv_0..lv_{K-1}).
    aux_ref : (3*S, 2K*Lpad), S = round_up(2K, 8):
              rows [0, 2K)      : fc_layer weight column, lane-staggered — row h
                                  carries fc_w in lanes [h*Lpad, h*Lpad+L)
              rows [S, S+2K)    : fc_layer bias, staggered identically
              rows [2S, 2S+2K)  : per-head bias b_h in lanes [0, L)
    mu_ref  : (K, L)   mu heads
    std_ref : (K, L)   Hardtanh(-6, 2)-clipped log-var heads
    """
    H = 2 * K
    S = _round_up(H, 8)

    w_stag = aux_ref[0:H, :]            # (H, 2K*Lpad)
    b_stag = aux_ref[S:S + H, :]        # (H, 2K*Lpad)
    bias = aux_ref[2 * S:2 * S + H, 0:L]  # (H, L)

    # x = ReLU(fc_layer(idle_input)) with idle_input == eye(1): pure VPU add+max.
    # Because w/b are lane-staggered per head, X is the block-diagonal LHS
    # (off-block lanes are ReLU(0 + 0) = 0), so one MXU matmul covers every
    # mu_enc and log_var_enc head and lands the result head-major.
    x_blk = jnp.maximum(w_stag + b_stag, 0.0)              # (H, 2K*Lpad)

    y = jnp.dot(x_blk, w_ref[...],
                preferred_element_type=jnp.float32) + bias  # (H, L)

    mu_ref[...] = y[0:K, :]
    # nn.Hardtanh(min_val=-6.0, max_val=2.0) on the log-var heads only.
    std_ref[...] = jnp.clip(y[K:H, :], -6.0, 2.0)


def pack_params(params):
    """One-time packing of all GMMNet parameters into two small slabs."""
    idle = params["idle_input"]
    n_dims = idle.shape[0]
    # The original PyTorch forward only executes without error when n_dims == 1,
    # and the fc-layer simplification in the kernel relies on the same fact.
    assert n_dims == 1, "GMMNet.forward row-assignment requires n_dims == 1"

    fc_w, fc_b = params["fc_w"], params["fc_b"]      # (L, 1), (L,)
    mu_w, mu_b = params["mu_w"], params["mu_b"]      # (K, L, L), (K, L)
    lv_w, lv_b = params["lv_w"], params["lv_b"]      # (K, L, L), (K, L)
    K, L = mu_b.shape

    H = 2 * K
    Lpad = _round_up(L, 8)
    R = H * Lpad                                     # stacked contraction dim
    S = _round_up(H, 8)

    # Head-stacked fused weight (in, out): rows [h*Lpad, h*Lpad+L) = head h.
    w_heads = jnp.concatenate([mu_w, lv_w], axis=0)          # (H, L, L) PyTorch (out,in)
    wT = jnp.transpose(w_heads, (0, 2, 1))                   # (H, L, L) -> (in, out)
    w_stacked = jnp.zeros((R, L), jnp.float32)
    for h in range(H):
        w_stacked = w_stacked.at[h * Lpad:h * Lpad + L, :].set(wT[h])

    # Aux slab: staggered fc weight/bias rows + per-head bias rows.
    aux = jnp.zeros((3 * S, R), jnp.float32)
    for h in range(H):
        aux = aux.at[h, h * Lpad:h * Lpad + L].set(fc_w[:, 0])
        aux = aux.at[S + h, h * Lpad:h * Lpad + L].set(fc_b)
    b_heads = jnp.concatenate([mu_b, lv_b], axis=0)          # (H, L)
    aux = aux.at[2 * S:2 * S + H, :L].set(b_heads)

    return w_stacked, aux, K, L


@functools.partial(jax.jit, static_argnums=(2, 3))
def gmmnet_forward(w_stacked, aux, K, L):
    """Forward pass: one pallas_call, mu / std returned directly (no glue)."""
    H = 2 * K
    R = w_stacked.shape[0]
    Lpad = R // H

    vmem = pl.BlockSpec(memory_space=pltpu.MemorySpace.VMEM)
    cost = pl.CostEstimate(
        flops=2 * H * R * L + 2 * H * R + H * L,
        transcendentals=0,
        bytes_accessed=(w_stacked.size + aux.size + 2 * K * L) * 4,
    )
    mu, std = pl.pallas_call(
        functools.partial(_gmmnet_kernel, K, L, Lpad),
        out_shape=(jax.ShapeDtypeStruct((K, L), jnp.float32),
                   jax.ShapeDtypeStruct((K, L), jnp.float32)),
        in_specs=[vmem, vmem],
        out_specs=(vmem, vmem),
        cost_estimate=cost,
    )(w_stacked, aux)
    return mu, std


def _init_linear(key, in_f, out_f):
    """Deterministic PyTorch-style default Linear init: U(-1/sqrt(in), 1/sqrt(in))."""
    kw, kb = jax.random.split(key)
    bound = 1.0 / (in_f ** 0.5)
    w = jax.random.uniform(kw, (out_f, in_f), jnp.float32, -bound, bound)
    b = jax.random.uniform(kb, (out_f,), jnp.float32, -bound, bound)
    return w, b


def make_params(key, n_dims, latent_dims, K):
    keys = jax.random.split(key, 1 + 2 * K)
    fc_w, fc_b = _init_linear(keys[0], n_dims, latent_dims)
    mu_w, mu_b, lv_w, lv_b = [], [], [], []
    for k in range(K):
        w, b = _init_linear(keys[1 + 2 * k], latent_dims, latent_dims)
        mu_w.append(w); mu_b.append(b)
        w, b = _init_linear(keys[2 + 2 * k], latent_dims, latent_dims)
        lv_w.append(w); lv_b.append(b)
    return {
        "idle_input": jnp.eye(n_dims, dtype=jnp.float32),
        "fc_w": fc_w, "fc_b": fc_b,
        "mu_w": jnp.stack(mu_w), "mu_b": jnp.stack(mu_b),
        "lv_w": jnp.stack(lv_w), "lv_b": jnp.stack(lv_b),
    }


def gmmnet_reference(params):
    """Pure-JAX reference of the PyTorch forward (n_dims == 1)."""
    x = jnp.maximum(params["idle_input"] @ params["fc_w"].T + params["fc_b"], 0.0)
    K = params["mu_b"].shape[0]
    mu = jnp.concatenate(
        [x @ params["mu_w"][k].T + params["mu_b"][k] for k in range(K)], 0)
    std = jnp.concatenate(
        [jnp.clip(x @ params["lv_w"][k].T + params["lv_b"][k], -6.0, 2.0)
         for k in range(K)], 0)
    return mu, std


if __name__ == "__main__":
    n_dims, latent_dims, K = 1, 32, 2   # n_dims must be 1 for the original forward to run
    params = make_params(jax.random.PRNGKey(0), n_dims, latent_dims, K)

    # Pack once (init-time glue), then the forward is a single pallas_call.
    w_stacked, aux, K_, L_ = pack_params(params)

    mu, std = gmmnet_forward(w_stacked, aux, K_, L_)
    jax.block_until_ready((mu, std))

    mu_ref, std_ref = gmmnet_reference(params)
    assert mu.shape == (K, latent_dims) and std.shape == (K, latent_dims)
    assert jnp.allclose(mu, mu_ref, atol=1e-5, rtol=1e-5)
    assert jnp.allclose(std, std_ref, atol=1e-5, rtol=1e-5)

    print("KERNEL_OK")
</pallas_src>

<mosaic_0001>
module attributes {stable_mosaic.version = 11 : i64} {
  func.func @_gmmnet_kernel(%arg0: memref<128x32xf32, #tpu.memory_space<vmem>>, %arg1: memref<24x128xf32, #tpu.memory_space<vmem>>, %arg2: memref<2x32xf32, #tpu.memory_space<vmem>>, %arg3: memref<2x32xf32, #tpu.memory_space<vmem>>) attributes {dimension_semantics = [], scalar_prefetch = 0 : i64, scratch_operands = 0 : i64, tpu.core_type = #tpu.core_type<tc>} {
    %c0 = arith.constant 0 : index
    %c0_0 = arith.constant 0 : index
    %0 = vector.load %arg1[%c0, %c0_0] : memref<24x128xf32, #tpu.memory_space<vmem>>, vector<4x128xf32>
    %c8 = arith.constant 8 : index
    %c0_1 = arith.constant 0 : index
    %1 = vector.load %arg1[%c8, %c0_1] : memref<24x128xf32, #tpu.memory_space<vmem>>, vector<4x128xf32>
    %c16 = arith.constant 16 : index
    %c0_2 = arith.constant 0 : index
    %2 = vector.load %arg1[%c16, %c0_2] : memref<24x128xf32, #tpu.memory_space<vmem>>, vector<4x32xf32>
    %3 = arith.addf %0, %1 : vector<4x128xf32>
    %cst = arith.constant 0.000000e+00 : f32
    %4 = vector.broadcast %cst : f32 to vector<4x128xf32>
    %5 = arith.maximumf %3, %4 : vector<4x128xf32>
    %c0_3 = arith.constant 0 : index
    %c0_4 = arith.constant 0 : index
    %6 = vector.load %arg0[%c0_3, %c0_4] : memref<128x32xf32, #tpu.memory_space<vmem>>, vector<128x32xf32>
    %cst_5 = arith.constant dense<0.000000e+00> : vector<4x32xf32>
    %7 = tpu.matmul %5, %6, %cst_5 {dimension_numbers = #tpu.dot_dimension_numbers<[1], [0], [0], [1], [0, 0, 1, 1], [], []>} : vector<4x128xf32>, vector<128x32xf32>, vector<4x32xf32> -> vector<4x32xf32>
    %8 = arith.addf %7, %2 : vector<4x32xf32>
    %9 = vector.extract_strided_slice %8 {offsets = [0, 0], sizes = [2, 32], strides = [1, 1]} : vector<4x32xf32> to vector<2x32xf32>
    %c0_6 = arith.constant 0 : index
    %c0_7 = arith.constant 0 : index
    %10 = vector.load %arg2[%c0_6, %c0_7] : memref<2x32xf32, #tpu.memory_space<vmem>>, vector<2x32xf32>
    tpu.vector_store %arg2[%c0_6, %c0_7], %9 {strides = array<i32>} : memref<2x32xf32, #tpu.memory_space<vmem>>, vector<2x32xf32>,
    %11 = vector.extract_strided_slice %8 {offsets = [2, 0], sizes = [2, 32], strides = [1, 1]} : vector<4x32xf32> to vector<2x32xf32>
    %cst_8 = arith.constant -6.000000e+00 : f32
    %cst_9 = arith.constant 2.000000e+00 : f32
    %12 = vector.broadcast %cst_8 : f32 to vector<2x32xf32>
    %13 = arith.maximumf %12, %11 : vector<2x32xf32>
    %14 = vector.broadcast %cst_9 : f32 to vector<2x32xf32>
    %15 = arith.minimumf %14, %13 : vector<2x32xf32>
    %c0_10 = arith.constant 0 : index
    %c0_11 = arith.constant 0 : index
    %16 = vector.load %arg3[%c0_10, %c0_11] : memref<2x32xf32, #tpu.memory_space<vmem>>, vector<2x32xf32>
    tpu.vector_store %arg3[%c0_10, %c0_11], %15 {strides = array<i32>} : memref<2x32xf32, #tpu.memory_space<vmem>>, vector<2x32xf32>,
    return
  }
}

</mosaic_0001>

<llo_original>
// kernel: gmmnet_forward.1
$region0: #{gmmnet_forward.1}
  #allocation0 [shape = 'u32[]', space=smem, size = 0x4, offset = 0x4, fixed_abs, tag = 'smem constant byte address 0x4 - core index']
  #allocation1 [shape = 'u32[72,128]{1,0:T(1,128)}', space=vmem, size = 0x9000, scoped, tag = 'internal scratch']
  %s0 = inlined_call_operand.vmem [shape: f32[128,32], index: 0, kind: input, shape index: {}]
  %s1 = inlined_call_operand.vmem [shape: f32[24,128], index: 1, kind: input, shape index: {}]
  %s2 = inlined_call_operand.hbm [shape: f32[2,32], index: 2, kind: output, shape index: {0}]
  %s3 = inlined_call_operand.hbm [shape: f32[2,32], index: 3, kind: output, shape index: {1}]
  %4 = xla_tuple %s2, %s3
  %s5 = sld [smem:[#allocation0]]
  $region26: #{gmmnet_forward.1} parent=0
    _
  %s7 = ssub.s32 1, %s5
  %s8 = scalar_select 0, %s7, %s5
  $region1: #{gmmnet_forward.1} parent=0
    #allocation2 [shape = 'u8[1024]{0}', space=vmem, size = 0x400, scoped, tag = 'output window, operand 0, single buffered']
    #allocation3 [shape = 's32[1]{0}', space=sflag, size = 0x4, scoped, tag = 'scoped memory for gmmnet_forward.1']
    #allocation4 [shape = 'u8[1024]{0}', space=vmem, size = 0x400, scoped, tag = 'output window, operand 1, single buffered']
    #allocation5 [shape = 's32[1]{0}', space=sflag, size = 0x4, scoped, tag = 'scoped memory for gmmnet_forward.1']
    %9 = vsyncpa [#allocation3], 0
    %10 = vsyncpa [#allocation5], 0
    // Predicated region
    $region2: #{gmmnet_forward.1} parent=1 // pred_check
      _
    $region3: #{gmmnet_forward.1} parent=1 // pred_check_branch
      %12 = sbr.rel (0) target = $region5
    $region4: #{gmmnet_forward.1} parent=1 // pred_region
      _
    $region5: #{gmmnet_forward.1} parent=1 // pred_fallthru
      _
    // Predicated region
    $region6: #{gmmnet_forward.1} parent=1 // pred_check
      _
    $region7: #{gmmnet_forward.1} parent=1 // pred_check_branch
      %14 = sbr.rel (0) target = $region9
    $region8: #{gmmnet_forward.1} parent=1 // pred_region
      _
    $region9: #{gmmnet_forward.1} parent=1 // pred_fallthru
      _
    %v15 = vld [vmem:[%s1] sm:$0xf]
    %v16 = vld [vmem:[%s1 + $0x8] sm:$0xf]
    %v17 = vld [vmem:[%s1 + $0x10] sm:$0xf]
    %v18 = vadd.f32 %v15, %v16
    %v19 = vmax.f32 %v18, 0.0
    %v20 = vld [vmem:[%s0] sm:$0xff]
    %v21 = vld [vmem:[%s0 + $0x8] sm:$0xff]
    %v22 = vld [vmem:[%s0 + $0x10] sm:$0xff]
    %v23 = vld [vmem:[%s0 + $0x18] sm:$0xff]
    %v24 = vld [vmem:[%s0 + $0x20] sm:$0xff]
    %v25 = vld [vmem:[%s0 + $0x28] sm:$0xff]
    %v26 = vld [vmem:[%s0 + $0x30] sm:$0xff]
    %v27 = vld [vmem:[%s0 + $0x38] sm:$0xff]
    %v28 = vld [vmem:[%s0 + $0x40] sm:$0xff]
    %v29 = vld [vmem:[%s0 + $0x48] sm:$0xff]
    %v30 = vld [vmem:[%s0 + $0x50] sm:$0xff]
    %v31 = vld [vmem:[%s0 + $0x58] sm:$0xff]
    %v32 = vld [vmem:[%s0 + $0x60] sm:$0xff]
    %v33 = vld [vmem:[%s0 + $0x68] sm:$0xff]
    %v34 = vld [vmem:[%s0 + $0x70] sm:$0xff]
    %v35 = vld [vmem:[%s0 + $0x78] sm:$0xff]
    %36 = vmatpush.msra.mxu0 %v35
    %37 = vmatpush.msra.mxu0 %v34
    %38 = vmatpush.msra.mxu0 %v33
    %39 = vmatpush.msra.mxu0 %v32
    %40 = vmatpush.msra.mxu0 %v31
    %41 = vmatpush.msra.mxu0 %v30
    %42 = vmatpush.msra.mxu0 %v29
    %43 = vmatpush.msra.mxu0 %v28
    %44 = vmatpush.msra.mxu0 %v27
    %45 = vmatpush.msra.mxu0 %v26
    %46 = vmatpush.msra.mxu0 %v25
    %47 = vmatpush.msra.mxu0 %v24
    %48 = vmatpush.msra.mxu0 %v23
    %49 = vmatpush.msra.mxu0 %v22
    %50 = vmatpush.msra.mxu0 %v21
    %51 = vmatpush.msra.mxu0 %v20
    %52 = vmatmul.f32.gmra.mxu0 %v19
    %v53 = vpop.f32.mrf.mxu0
    %v54 = vadd.f32 %v17, %v53
    %55 = vdwg.mxu0
    %vm56 = vcmask 254976
    %57 = vst.msk [vmem:[#allocation2] sm:$0x3] %vm56, %v54
    %v58 = vmax.f32 %v54, -6.0
    %v59 = vmin.f32 %v58, 2.0
    %vm60 = vcmask 257026
    %61 = vst.msk [vmem:[#allocation4 - $0x2] sm:$0xc] %vm60, %v59
    // Predicated region
    $region10: #{gmmnet_forward.1} parent=1 // pred_check
      _
    $region11: #{gmmnet_forward.1} parent=1 // pred_check_branch
      %63 = sbr.rel (0) target = $region13
    $region12: #{gmmnet_forward.1} parent=1 // pred_region
      %65 = vsyncadd [#allocation3], 0
      %s67 = sshll.u32 [#allocation2], 4
      %s68 = int_to_ptr.vmem [resolvable:$true] %s67
      %s69 = sshll.u32 %s2, 4
      %s70 = int_to_ptr.hbm [resolvable:$true] %s69
      %72 = dma.vmem_to_hbm [thread:$0]  %s68, 32, %s70, [#allocation3]
    $region13: #{gmmnet_forward.1} parent=1 // pred_fallthru
      _
    // Predicated region
    $region14: #{gmmnet_forward.1} parent=1 // pred_check
      _
    $region15: #{gmmnet_forward.1} parent=1 // pred_check_branch
      %74 = sbr.rel (0) target = $region17
    $region16: #{gmmnet_forward.1} parent=1 // pred_region
      %76 = vsyncadd [#allocation5], 0
      %s78 = sshll.u32 [#allocation4], 4
      %s79 = int_to_ptr.vmem [resolvable:$true] %s78
      %s80 = sshll.u32 %s3, 4
      %s81 = int_to_ptr.hbm [resolvable:$true] %s80
      %83 = dma.vmem_to_hbm [thread:$0]  %s79, 32, %s81, [#allocation5]
    $region17: #{gmmnet_forward.1} parent=1 // pred_fallthru
      _
    // Predicated region
    $region18: #{gmmnet_forward.1} parent=1 // pred_check
      _
    $region19: #{gmmnet_forward.1} parent=1 // pred_check_branch
      %85 = sbr.rel (0) target = $region21
    $region20: #{gmmnet_forward.1} parent=1 // pred_region
      %87 = dma.done [#allocation3], 32
    $region21: #{gmmnet_forward.1} parent=1 // pred_fallthru
      _
    // Predicated region
    $region22: #{gmmnet_forward.1} parent=1 // pred_check
      _
    $region23: #{gmmnet_forward.1} parent=1 // pred_check_branch
      %89 = sbr.rel (0) target = $region25
    $region24: #{gmmnet_forward.1} parent=1 // pred_region
      %91 = dma.done [#allocation5], 32
    $region25: #{gmmnet_forward.1} parent=1 // pred_fallthru
      _
    %92 = vsyncpa [#allocation3], 1
    %93 = vsyncpa [#allocation5], 1

</llo_original>
